<compile_context>
chip_gen: v7x
topology: tpu7x:2x2x1
jax: 0.10.0
libtpu: 0.0.40
codegen_flags: <defaults>
</compile_context>

<pallas_src>
import functools

import jax
import jax.numpy as jnp
from jax.experimental import pallas as pl
from jax.experimental.pallas import tpu as pltpu

NEG_SLOPE = 0.1          # LeakyReLU slope used by YOLOv3 conv layers
BN_EPS = 1e-5
_TM_MAX = 2048           # cap on the M tile (rows) per grid step


def _round_up(x, m):
    return (x + m - 1) // m * m


def _cpad(c):
    """Channel count padded to a lane-dense multiple of 128."""
    return _round_up(max(c, 128), 128)


@functools.lru_cache(maxsize=1)
def _vmem_plan():
    """(tile_budget_bytes, vmem_limit_bytes) gated on the detected generation.

    Conservative plan fits v7x's 64 MiB VMEM; 128 MiB parts (v5e/v6e) get a
    larger budget so their extra VMEM is not left idle."""
    budget, limit = 24 << 20, 40 << 20
    try:
        info = pltpu.get_tpu_info()
        vmem = getattr(info, "vmem_capacity_bytes", 0) or 0
        if vmem >= (100 << 20):
            budget, limit = 48 << 20, 96 << 20
    except Exception:
        pass  # unknown part -> keep the conservative (v7x-safe) plan
    return budget, limit


# ---------------------------------------------------------------------------
# Pallas kernels
# ---------------------------------------------------------------------------
def _conv_kernel_fullk(p_ref, w_ref, b_ref, o_ref):
    """Full-K tile: o = leaky_relu(p @ w + b), bf16 store, f32 math."""
    y = jnp.dot(p_ref[...], w_ref[...], preferred_element_type=jnp.float32)
    y = y + b_ref[...]
    o_ref[...] = jnp.maximum(y, NEG_SLOPE * y).astype(o_ref.dtype)


def _conv_kernel_fullk_res(p_ref, w_ref, b_ref, sc_ref, o_ref):
    """Full-K tile with fused residual add."""
    y = jnp.dot(p_ref[...], w_ref[...], preferred_element_type=jnp.float32)
    y = y + b_ref[...]
    y = jnp.maximum(y, NEG_SLOPE * y)
    o_ref[...] = (y + sc_ref[...].astype(jnp.float32)).astype(o_ref.dtype)


def _conv_kernel_kloop(p_ref, w_ref, b_ref, o_ref, acc_ref):
    """K-loop fallback: f32 VMEM scratch accumulator, bf16 output."""
    k = pl.program_id(2)

    @pl.when(k == 0)
    def _():
        acc_ref[...] = jnp.zeros_like(acc_ref)

    acc_ref[...] += jnp.dot(p_ref[...], w_ref[...],
                            preferred_element_type=jnp.float32)

    @pl.when(k == pl.num_programs(2) - 1)
    def _():
        y = acc_ref[...] + b_ref[...]
        o_ref[...] = jnp.maximum(y, NEG_SLOPE * y).astype(o_ref.dtype)


def _conv_kernel_kloop_res(p_ref, w_ref, b_ref, sc_ref, o_ref, acc_ref):
    k = pl.program_id(2)

    @pl.when(k == 0)
    def _():
        acc_ref[...] = jnp.zeros_like(acc_ref)

    acc_ref[...] += jnp.dot(p_ref[...], w_ref[...],
                            preferred_element_type=jnp.float32)

    @pl.when(k == pl.num_programs(2) - 1)
    def _():
        y = acc_ref[...] + b_ref[...]
        y = jnp.maximum(y, NEG_SLOPE * y)
        o_ref[...] = (y + sc_ref[...].astype(jnp.float32)).astype(o_ref.dtype)


# ---------------------------------------------------------------------------
# Fused conv-as-matmul + BN bias + LeakyReLU (+ optional residual) wrapper
# ---------------------------------------------------------------------------
def fused_conv_matmul(patches, weight, bias, shortcut=None, *, force_tk=None):
    """patches: (M, K) bf16; weight: (Kw, Np) bf16 (BN scale folded, Kw % 128 == 0
    for the network); bias: (1, Np) f32; shortcut: optional (M, Np) bf16.
    Returns bf16 (M, Np) = leaky_relu(patches @ weight + bias) [+ shortcut]."""
    M, K = patches.shape
    Kw, Np = weight.shape
    has_sc = shortcut is not None
    budget, vmem_limit = _vmem_plan()

    # Align K to the (pre-padded) weight rows and to a 128-lane multiple so the
    # MXU contraction never sees unaligned / garbage lanes (only conv1 pads).
    Kp = max(Kw, _round_up(K, 128))
    if K != Kp:
        patches = jnp.pad(patches, ((0, 0), (0, Kp - K)))
    if Kw != Kp:
        weight = jnp.pad(weight, ((0, Kp - Kw), (0, 0)))
    K = Kp

    # ---- output-column tile: lane-dense, and narrow on the small-M tail so a
    # v7x megacore sees >= 2 parallel blocks ----------------------------------
    if Np % 128 == 0:
        tn = 256 if (Np % 256 == 0 and M > 256) else 128
    else:
        tn = Np                                            # full-extent (tests only)

    out_row_bytes = 2 * tn * 2 * (2 if has_sc else 1)      # out (+sc), double-buffered

    use_kloop = force_tk is not None
    tm_cap = 0
    if not use_kloop:
        w_bytes = 2 * K * tn * 2 + 2 * tn * 4              # weight + bias tiles
        per_row = 2 * K * 2 + out_row_bytes                # patch rows + out rows
        tm_cap = (budget - w_bytes - (512 << 10)) // per_row
        use_kloop = tm_cap < 64

    if not use_kloop:
        # Full-K resident tiles: one MXU pass per output tile, no K grid axis,
        # no scratch accumulator; ragged last M tile is masked on store.
        tm = int(min(_TM_MAX, tm_cap, _round_up(M, 16)))
        tm = max(16, (tm // 16) * 16)
        grid = (pl.cdiv(M, tm), pl.cdiv(Np, tn))
        in_specs = [
            pl.BlockSpec((tm, K), lambda i, j: (i, 0)),
            pl.BlockSpec((K, tn), lambda i, j: (0, j)),
            pl.BlockSpec((1, tn), lambda i, j: (0, j)),
        ]
        args = [patches, weight, bias]
        kernel = _conv_kernel_fullk
        if has_sc:
            args.append(shortcut)
            in_specs.append(pl.BlockSpec((tm, tn), lambda i, j: (i, j)))
            kernel = _conv_kernel_fullk_res
        out_spec = pl.BlockSpec((tm, tn), lambda i, j: (i, j))
        dims = ("parallel", "parallel")
        scratch = ()
    else:
        # K-loop fallback (only for K too large for the budget, or forced by
        # tests): K must be zero-padded to a tk multiple, since garbage in the
        # contraction would corrupt valid output rows.
        tm = max(16, min(256, _round_up(M, 16)))
        if force_tk is not None:
            tk = int(force_tk)
        else:
            fixed = out_row_bytes * tm + 2 * tn * 4 + (512 << 10)
            tk = max(128, int((budget - fixed) // (2 * (tm + tn) * 2)) // 128 * 128)
        Kp2 = _round_up(K, tk)
        if Kp2 != K:
            patches = jnp.pad(patches, ((0, 0), (0, Kp2 - K)))
            weight = jnp.pad(weight, ((0, Kp2 - K), (0, 0)))
            K = Kp2
        grid = (pl.cdiv(M, tm), pl.cdiv(Np, tn), K // tk)
        in_specs = [
            pl.BlockSpec((tm, tk), lambda i, j, k: (i, k)),
            pl.BlockSpec((tk, tn), lambda i, j, k: (k, j)),
            pl.BlockSpec((1, tn), lambda i, j, k: (0, j)),
        ]
        args = [patches, weight, bias]
        kernel = _conv_kernel_kloop
        if has_sc:
            args.append(shortcut)
            in_specs.append(pl.BlockSpec((tm, tn), lambda i, j, k: (i, j)))
            kernel = _conv_kernel_kloop_res
        out_spec = pl.BlockSpec((tm, tn), lambda i, j, k: (i, j))
        dims = ("parallel", "parallel", "arbitrary")
        scratch = (pltpu.VMEM((tm, tn), jnp.float32),)

    return pl.pallas_call(
        kernel,
        out_shape=jax.ShapeDtypeStruct((M, Np), jnp.bfloat16),
        grid_spec=pltpu.PrefetchScalarGridSpec(
            num_scalar_prefetch=0,
            grid=grid,
            in_specs=in_specs,
            out_specs=out_spec,
            scratch_shapes=scratch,
        ),
        compiler_params=pltpu.CompilerParams(
            dimension_semantics=dims,
            vmem_limit_bytes=vmem_limit),
    )(*args)


# ---------------------------------------------------------------------------
# Glue: im2col patch extraction (layout plumbing; compute stays in Pallas)
# TODO(synk): for 3x3 stride-1 layers, build patches inside the kernel (halo DMA
#             of the NHWC row slab + 9 shifted matmuls) to cut activation HBM
#             read traffic ~9x at realistic input sizes.
# ---------------------------------------------------------------------------
def _im2col(x, ksize, stride):
    """x: (N, H, W, C) bf16 -> (N*Ho*Wo, ksize*ksize*C), patch order (ky, kx, cin)."""
    n, h, w, c = x.shape
    if ksize == 1 and stride == 1:
        return x.reshape(n * h * w, c), (n, h, w)
    pad = ksize // 2
    xp = jnp.pad(x, ((0, 0), (pad, pad), (pad, pad), (0, 0)))
    ho = (h + 2 * pad - ksize) // stride + 1
    wo = (w + 2 * pad - ksize) // stride + 1
    cols = [xp[:, ky:ky + stride * ho:stride, kx:kx + stride * wo:stride, :]
            for ky in range(ksize) for kx in range(ksize)]
    patches = jnp.concatenate(cols, axis=-1)
    return patches.reshape(n * ho * wo, ksize * ksize * c), (n, ho, wo)


def yolo_conv(x, params, ksize, stride=1, shortcut=None):
    """YoloConvLayer: Conv2d(bias=False) + BN(eval, folded) + LeakyReLU(0.1).
    If `shortcut` is given it is added after the activation (ResBlock fusion)."""
    weight, bias = params
    cout_p = weight.shape[1]
    patches, (n, ho, wo) = _im2col(x, ksize, stride)
    sc2d = None
    if shortcut is not None:
        sc2d = shortcut.reshape(n * ho * wo, cout_p)
    y = fused_conv_matmul(patches, weight, bias, shortcut=sc2d)
    return y.reshape(n, ho, wo, cout_p)


# ---------------------------------------------------------------------------
# Parameters (deterministic synthetic init; BN folded into weight/bias;
# channels zero-padded to multiples of 128 and pre-cast to bf16 once at init)
# ---------------------------------------------------------------------------
def _init_conv_params(key, cin, cout, ksize, cin_p, cout_p):
    # NOTE: real PyTorch weights are (cout, cin, kh, kw) and must be permuted to
    # (kh, kw, cin, cout) (then zero-padded the same way) before flattening.
    kw, kg, kb = jax.random.split(key, 3)
    fan_in = cin * ksize * ksize
    weight = (jax.random.normal(kw, (ksize, ksize, cin, cout), jnp.float32)
              * jnp.sqrt(2.0 / fan_in))
    gamma = 1.0 + 0.1 * jax.random.normal(kg, (cout,), jnp.float32)
    beta = 0.1 * jax.random.normal(kb, (cout,), jnp.float32)
    mean = jnp.zeros((cout,), jnp.float32)
    var = jnp.ones((cout,), jnp.float32)
    scale = gamma / jnp.sqrt(var + BN_EPS)
    bias = beta - mean * scale

    # Fold BN scale into the conv weight; embed into zero-padded channel dims.
    w_full = jnp.zeros((ksize, ksize, cin_p, cout_p), jnp.float32)
    w_full = w_full.at[:, :, :cin, :cout].set(weight * scale)
    k_rows = ksize * ksize * cin_p
    w_flat = w_full.reshape(k_rows, cout_p)
    k_rows_p = _round_up(k_rows, 128)
    if k_rows_p != k_rows:                       # only conv1 (K=27 -> 128)
        w_flat = jnp.pad(w_flat, ((0, k_rows_p - k_rows), (0, 0)))
    w_folded = w_flat.astype(jnp.bfloat16)       # pre-cast MXU operand
    b_full = jnp.zeros((1, cout_p), jnp.float32).at[0, :cout].set(bias)
    return (w_folded, b_full)


_CR_BLOCKS = (  # (name, in_channels, out_channels, res_repeat)
    ("cr_block1", 32, 64, 1),
    ("cr_block2", 64, 128, 2),
    ("cr_block3", 128, 256, 8),
    ("cr_block4", 256, 512, 8),
    ("cr_block5", 512, 1024, 4),
)


def init_darknet53_params(key):
    n_convs = 1 + sum(1 + 2 * r for _, _, _, r in _CR_BLOCKS)
    keys = iter(jax.random.split(key, n_convs))
    params = {"conv1": _init_conv_params(next(keys), 3, 32, 3,
                                         cin_p=3, cout_p=_cpad(32))}
    cin_p = _cpad(32)
    for name, cin, cout, rep in _CR_BLOCKS:
        cout_p, half_p = _cpad(cout), _cpad(cout // 2)
        block = {"conv": _init_conv_params(next(keys), cin, cout, 3,
                                           cin_p=cin_p, cout_p=cout_p)}
        for i in range(rep):
            block[f"res{i}"] = {
                "conv1": _init_conv_params(next(keys), cout, cout // 2, 1,
                                           cin_p=cout_p, cout_p=half_p),
                "conv2": _init_conv_params(next(keys), cout // 2, cout, 3,
                                           cin_p=half_p, cout_p=cout_p),
            }
        params[name] = block
        cin_p = cout_p
    return params


# ---------------------------------------------------------------------------
# Forward pass (matches DarkNet53.forward)
# ---------------------------------------------------------------------------
def _res_block(x, p):
    # out = conv2(conv1(x)); out += x   -> residual add fused into conv2 kernel.
    h = yolo_conv(x, p["conv1"], ksize=1, stride=1)
    return yolo_conv(h, p["conv2"], ksize=3, stride=1, shortcut=x)


def _cr_block(x, p, res_repeat):
    x = yolo_conv(x, p["conv"], ksize=3, stride=2)
    for i in range(res_repeat):
        x = _res_block(x, p[f"res{i}"])
    return x


# TODO(synk): fuse each ResBlock's 1x1 + 3x3 convs into one pallas_call (both
#             bf16 weights resident in VMEM) to halve launches in the
#             launch-bound cr_block4/5 tail.
@functools.partial(jax.jit, static_argnames=("reverse_output",))
def darknet53_forward(x_nchw, params, reverse_output=False):
    # TODO(synk): norm_eval / _freeze_stages / init_weights only affect training;
    #             inference forward (eval-mode BN folded into weight/bias) is implemented.
    x = jnp.transpose(x_nchw, (0, 2, 3, 1)).astype(jnp.bfloat16)  # NCHW -> NHWC bf16
    tmp = yolo_conv(x, params["conv1"], ksize=3, stride=1)
    tmp = _cr_block(tmp, params["cr_block1"], 1)
    tmp = _cr_block(tmp, params["cr_block2"], 2)
    out3 = _cr_block(tmp, params["cr_block3"], 8)
    out2 = _cr_block(out3, params["cr_block4"], 8)
    out1 = _cr_block(out2, params["cr_block5"], 4)
    to_nchw = lambda t: jnp.transpose(t, (0, 3, 1, 2)).astype(jnp.float32)
    outs = (to_nchw(out1), to_nchw(out2), to_nchw(out3))
    return outs[::-1] if reverse_output else outs


if __name__ == "__main__":
    key = jax.random.PRNGKey(0)
    k_param, k_input, k_t1, k_t2, k_t3, k_t4 = jax.random.split(key, 6)

    # --- unit test of the K-loop fallback (dead code for DarkNet53 itself) ----
    M, K, N = 72, 300, 128
    p = jax.random.normal(k_t1, (M, K), jnp.float32).astype(jnp.bfloat16)
    w = (0.05 * jax.random.normal(k_t2, (K, N), jnp.float32)).astype(jnp.bfloat16)
    b = 0.1 * jax.random.normal(k_t3, (1, N), jnp.float32)
    sc = jax.random.normal(k_t4, (M, N), jnp.float32).astype(jnp.bfloat16)
    ref = p.astype(jnp.float32) @ w.astype(jnp.float32) + b
    ref = jnp.maximum(ref, NEG_SLOPE * ref)
    got = fused_conv_matmul(p, w, b, force_tk=128).astype(jnp.float32)
    assert bool(jnp.allclose(got, ref, rtol=5e-2, atol=5e-2)), "k-loop mismatch"
    got_res = fused_conv_matmul(p, w, b, shortcut=sc,
                                force_tk=128).astype(jnp.float32)
    assert bool(jnp.allclose(got_res, ref + sc.astype(jnp.float32),
                             rtol=5e-2, atol=5e-2)), "k-loop+res mismatch"

    # --- full network forward --------------------------------------------------
    params = init_darknet53_params(k_param)
    # Small input consistent with the module: NCHW, 3 input channels.
    x = jax.random.normal(k_input, (2, 3, 32, 32), dtype=jnp.float32)

    out1, out2, out3 = darknet53_forward(x, params)
    jax.block_until_ready((out1, out2, out3))

    assert out1.shape == (2, 1024, 1, 1), out1.shape
    assert out2.shape == (2, 512, 2, 2), out2.shape
    assert out3.shape == (2, 256, 4, 4), out3.shape
    assert all(bool(jnp.all(jnp.isfinite(o))) for o in (out1, out2, out3))
    print("KERNEL_OK")
</pallas_src>

<mosaic_0001>
module attributes {stable_mosaic.version = 11 : i64} {
  func.func @_conv_kernel_kloop(%arg0: i32, %arg1: i32, %arg2: i32, %arg3: memref<80x128xbf16, #tpu.memory_space<vmem>>, %arg4: memref<128x128xbf16, #tpu.memory_space<vmem>>, %arg5: memref<1x128xf32, #tpu.memory_space<vmem>>, %arg6: memref<80x128xbf16, #tpu.memory_space<vmem>>, %arg7: memref<80x128xf32, #tpu.memory_space<vmem>>) attributes {dimension_semantics = [#tpu.dimension_semantics<parallel>, #tpu.dimension_semantics<parallel>, #tpu.dimension_semantics<arbitrary>], iteration_bounds = array<i64: 1, 1, 3>, scalar_prefetch = 0 : i64, scratch_operands = 1 : i64, tpu.core_type = #tpu.core_type<tc>, window_params = [{transform_indices = @transform_0, window_bounds = array<i64: 80, 128>}, {transform_indices = @transform_1, window_bounds = array<i64: 128, 128>}, {transform_indices = @transform_2, window_bounds = array<i64: 1, 128>}, {transform_indices = @transform_3, window_bounds = array<i64: 80, 128>}]} {
    %c0_i32 = arith.constant 0 : i32
    %0 = arith.cmpi eq, %arg2, %c0_i32 : i32
    %1 = arith.extui %0 : i1 to i32
    %c0_i32_0 = arith.constant 0 : i32
    %2 = arith.cmpi ne, %1, %c0_i32_0 : i32
    scf.if %2 {
      %cst_9 = arith.constant 0.000000e+00 : f32
      %12 = vector.broadcast %cst_9 : f32 to vector<80x128xf32>
      %c0_10 = arith.constant 0 : index
      %c0_11 = arith.constant 0 : index
      %13 = vector.load %arg7[%c0_10, %c0_11] : memref<80x128xf32, #tpu.memory_space<vmem>>, vector<80x128xf32>
      tpu.vector_store %arg7[%c0_10, %c0_11], %12 {strides = array<i32>} : memref<80x128xf32, #tpu.memory_space<vmem>>, vector<80x128xf32>,
    } else {
    }
    %c0 = arith.constant 0 : index
    %c0_1 = arith.constant 0 : index
    %3 = vector.load %arg7[%c0, %c0_1] : memref<80x128xf32, #tpu.memory_space<vmem>>, vector<80x128xf32>
    %c0_2 = arith.constant 0 : index
    %c0_3 = arith.constant 0 : index
    %4 = vector.load %arg3[%c0_2, %c0_3] : memref<80x128xbf16, #tpu.memory_space<vmem>>, vector<80x128xbf16>
    %c0_4 = arith.constant 0 : index
    %c0_5 = arith.constant 0 : index
    %5 = vector.load %arg4[%c0_4, %c0_5] : memref<128x128xbf16, #tpu.memory_space<vmem>>, vector<128x128xbf16>
    %cst = arith.constant dense<0.000000e+00> : vector<80x128xf32>
    %6 = tpu.matmul %4, %5, %cst {dimension_numbers = #tpu.dot_dimension_numbers<[1], [0], [0], [1], [0, 0, 1, 1], [], []>} : vector<80x128xbf16>, vector<128x128xbf16>, vector<80x128xf32> -> vector<80x128xf32>
    %7 = arith.addf %3, %6 : vector<80x128xf32>
    %c0_6 = arith.constant 0 : index
    %c0_7 = arith.constant 0 : index
    %8 = vector.load %arg7[%c0_6, %c0_7] : memref<80x128xf32, #tpu.memory_space<vmem>>, vector<80x128xf32>
    tpu.vector_store %arg7[%c0_6, %c0_7], %7 {strides = array<i32>} : memref<80x128xf32, #tpu.memory_space<vmem>>, vector<80x128xf32>,
    %c2_i32 = arith.constant 2 : i32
    %9 = arith.cmpi eq, %arg2, %c2_i32 : i32
    %10 = arith.extui %9 : i1 to i32
    %c0_i32_8 = arith.constant 0 : i32
    %11 = arith.cmpi ne, %10, %c0_i32_8 : i32
    scf.if %11 {
      %c0_9 = arith.constant 0 : index
      %c0_10 = arith.constant 0 : index
      %12 = vector.load %arg7[%c0_9, %c0_10] : memref<80x128xf32, #tpu.memory_space<vmem>>, vector<80x128xf32>
      %c0_11 = arith.constant 0 : index
      %c0_12 = arith.constant 0 : index
      %13 = vector.load %arg5[%c0_11, %c0_12] : memref<1x128xf32, #tpu.memory_space<vmem>>, vector<1x128xf32>
      %14 = vector.broadcast %13 : vector<1x128xf32> to vector<80x128xf32>
      %15 = arith.addf %12, %14 : vector<80x128xf32>
      %cst_13 = arith.constant 1.000000e-01 : f32
      %16 = vector.broadcast %cst_13 : f32 to vector<80x128xf32>
      %17 = arith.mulf %16, %15 : vector<80x128xf32>
      %18 = arith.maximumf %15, %17 : vector<80x128xf32>
      %19 = arith.truncf %18 : vector<80x128xf32> to vector<80x128xbf16>
      %c0_14 = arith.constant 0 : index
      %c0_15 = arith.constant 0 : index
      %20 = vector.load %arg6[%c0_14, %c0_15] : memref<80x128xbf16, #tpu.memory_space<vmem>>, vector<80x128xbf16>
      tpu.vector_store %arg6[%c0_14, %c0_15], %19 {strides = array<i32>} : memref<80x128xbf16, #tpu.memory_space<vmem>>, vector<80x128xbf16>,
    } else {
    }
    return
  }
  func.func @transform_0(%arg0: i32, %arg1: i32, %arg2: i32) -> (i32, i32) {
    %c0_i32 = arith.constant 0 : i32
    return %arg0, %arg2 : i32, i32
  }
  func.func @transform_1(%arg0: i32, %arg1: i32, %arg2: i32) -> (i32, i32) {
    %c0_i32 = arith.constant 0 : i32
    return %arg2, %arg1 : i32, i32
  }
  func.func @transform_2(%arg0: i32, %arg1: i32, %arg2: i32) -> (i32, i32) {
    %c0_i32 = arith.constant 0 : i32
    %c0_i32_0 = arith.constant 0 : i32
    return %c0_i32, %arg1 : i32, i32
  }
  func.func @transform_3(%arg0: i32, %arg1: i32, %arg2: i32) -> (i32, i32) {
    %c0_i32 = arith.constant 0 : i32
    return %arg0, %arg1 : i32, i32
  }
}

</mosaic_0001>

<llo_original>
// kernel: tpu_custom_call.1
$region0: #{tpu_custom_call.1}
  #allocation0 [shape = 'u32[]', space=smem, size = 0x4, offset = 0x4, fixed_abs, tag = 'smem constant byte address 0x4 - core index']
  #allocation1 [shape = 'u32[144,128]{1,0:T(1,128)}', space=vmem, size = 0x12000, scoped, tag = 'internal scratch']
  #allocation2 [shape = 'f32[80,128]{1,0:T(8,128)}', space=vmem, size = 0xa000, scoped, tag = 'scratch operand']
  %s0 = inlined_call_operand.hbm [shape: bf16[72,384], index: 0, kind: input, shape index: {}]
  %s1 = inlined_call_operand.hbm [shape: bf16[384,128], index: 1, kind: input, shape index: {}]
  %s2 = inlined_call_operand.vmem [shape: f32[1,128], index: 2, kind: input, shape index: {}]
  %s3 = inlined_call_operand.hbm [shape: bf16[72,128], index: 3, kind: output, shape index: {}]
  %s4 = sld [smem:[#allocation0]]
  $region61: #{tpu_custom_call.1} parent=0
    _
  %s6 = ssub.s32 1, %s4
  %s7 = scalar_select 0, %s6, %s4
  $region1: #{tpu_custom_call.1} parent=0
    #allocation3 [shape = 'u8[40960]{0}', space=vmem, size = 0xa000, scoped, tag = 'input window, operand 0']
    #allocation4 [shape = 's32[2]{0}', space=sflag, size = 0x8, scoped, tag = 'scoped memory for tpu_custom_call.1']
    #allocation5 [shape = 's32[2]{0}', space=sflag, size = 0x8, scoped, tag = 'scoped memory for tpu_custom_call.1']
    #allocation6 [shape = 'u8[65536]{0}', space=vmem, size = 0x10000, scoped, tag = 'input window, operand 1']
    #allocation7 [shape = 's32[2]{0}', space=sflag, size = 0x8, scoped, tag = 'scoped memory for tpu_custom_call.1']
    #allocation8 [shape = 'u8[20480]{0}', space=vmem, size = 0x5000, scoped, tag = 'output window, operand 0, single buffered']
    %8 = vsyncpa [#allocation4], 0
    %s9 = scalar_lea.sflag [#allocation4], 1
    %10 = vsyncpa %s9, 0
    %11 = vsyncpa [#allocation7], 0
    %s12 = scalar_lea.sflag [#allocation7], 1
    %13 = vsyncpa %s12, 0
    %14 = vsyncpa [#allocation5], 0
    loop: start=0, step=1, limit=5
    $region2: #{tpu_custom_call.1} parent=1 // loop_pre_header
      _
    $region3: #{tpu_custom_call.1} parent=1 // loop_header
      %s16 = sphi 0, %s20
      %p17 = scmp.ge.s32.totalorder %s16, 5
      %s23 = sphi 0, %s42
      %s24 = sphi 0, %s38
      %s25 = sphi 0, %s34
      %s26 = sphi 0, %s23
      %s27 = sphi 0, %s24
      %s28 = sphi 0, %s25
      %s29 = sphi 0, %s26
      %s30 = sphi 0, %s27
      %s31 = sphi 0, %s28
      %s47 = sphi 0, %s49
      %s50 = sphi 0, %s47
      %s51 = sphi 0, %s50
      %s67 = sphi 0, %s51
      %s75 = sphi 0, %s77
      %s78 = sphi 0, %s75
      %s79 = sphi 0, %s78
      %s95 = sphi 0, %s79
      %s101 = sphi 0, %s103
      %s104 = sphi 0, %s101
      %s105 = sphi 0, %s104
      %s121 = sphi 0, %s105
      %s129 = sphi 0, %s131
      %s132 = sphi 0, %s129
      %s133 = sphi 0, %s132
      %s149 = sphi 0, %s133
    $region4: #{tpu_custom_call.1} parent=1 // loop_header_branch
      %19 = sbr.rel (%p17) target = $region8
    $region5: #{tpu_custom_call.1} parent=1 // loop_body
      %s21 = ssub.s32 %s16, 1
      %s22 = ssub.s32 %s16, 2
      %s32 = sadd.s32 1, %s25
      %p33 = scmp.ge.s32.totalorder %s32, 3
      %s34 = scalar_select %p33, 0, %s32
      %s35 = sadd.s32 1, %s24
      %s36 = scalar_select %p33, %s35, %s24
      %p37 = scmp.ge.s32.totalorder %s36, 1
      %s38 = scalar_select %p37, 0, %s36
      %s39 = sadd.s32 1, %s23
      %s40 = scalar_select %p37, %s39, %s23
      %p41 = scmp.ge.s32.totalorder %s40, 1
      %s42 = scalar_select %p41, 0, %s40
      %s43 = ssub.s32 %s23, %s42
      %s44 = ssub.s32 %s25, %s34
      %s45 = sor.u32 %s43, %s44
      %p46 = scmp.eq.s32.totalorder %s45, 0
      %s48 = sadd.s32 %s47, 1
      %s49 = scalar_select %p46, %s47, %s48
      %p52 = pneg %p46
      %p53 = scmp.eq.s32.totalorder %s16, 2
      %p54 = por %p52, %p53
      %p55 = scmp.ne.s32.totalorder %s47, %s50
      %p56 = scmp.eq.s32.totalorder %s16, 0
      %p57 = por %p55, %p56
      %p58 = scmp.ne.s32.totalorder %s47, %s50
      %p59 = scmp.eq.s32.totalorder %s21, 2
      %p60 = por %p58, %p59
      %p61 = scmp.ne.s32.totalorder %s50, %s51
      %p62 = scmp.eq.s32.totalorder %s21, 0
      %p63 = por %p61, %p62
      %p64 = scmp.ne.s32.totalorder %s50, %s51
      %p65 = scmp.eq.s32.totalorder %s22, 2
      %p66 = por %p64, %p65
      %p68 = scmp.ne.s32.totalorder %s51, %s67
      %p69 = scmp.eq.s32.totalorder %s22, 0
      %p70 = por %p68, %p69
      %s71 = ssub.s32 %s25, %s34
      %s72 = ssub.s32 %s24, %s38
      %s73 = sor.u32 %s71, %s72
      %p74 = scmp.eq.s32.totalorder %s73, 0
      %s76 = sadd.s32 %s75, 1
      %s77 = scalar_select %p74, %s75, %s76
      %p80 = pneg %p74
      %p81 = scmp.eq.s32.totalorder %s16, 2
      %p82 = por %p80, %p81
      %p83 = scmp.ne.s32.totalorder %s75, %s78
      %p84 = scmp.eq.s32.totalorder %s16, 0
      %p85 = por %p83, %p84
      %p86 = scmp.ne.s32.totalorder %s75, %s78
      %p87 = scmp.eq.s32.totalorder %s21, 2
      %p88 = por %p86, %p87
      %p89 = scmp.ne.s32.totalorder %s78, %s79
      %p90 = scmp.eq.s32.totalorder %s21, 0
      %p91 = por %p89, %p90
      %p92 = scmp.ne.s32.totalorder %s78, %s79
      %p93 = scmp.eq.s32.totalorder %s22, 2
      %p94 = por %p92, %p93
      %p96 = scmp.ne.s32.totalorder %s79, %s95
      %p97 = scmp.eq.s32.totalorder %s22, 0
      %p98 = por %p96, %p97
      %s99 = ssub.s32 %s24, %s38
      %p100 = scmp.eq.s32.totalorder %s99, 0
      %s102 = sadd.s32 %s101, 1
      %s103 = scalar_select %p100, %s101, %s102
      %p106 = pneg %p100
      %p107 = scmp.eq.s32.totalorder %s16, 2
      %p108 = por %p106, %p107
      %p109 = scmp.ne.s32.totalorder %s101, %s104
      %p110 = scmp.eq.s32.totalorder %s16, 0
      %p111 = por %p109, %p110
      %p112 = scmp.ne.s32.totalorder %s101, %s104
      %p113 = scmp.eq.s32.totalorder %s21, 2
      %p114 = por %p112, %p113
      %p115 = scmp.ne.s32.totalorder %s104, %s105
      %p116 = scmp.eq.s32.totalorder %s21, 0
      %p117 = por %p115, %p116
      %p118 = scmp.ne.s32.totalorder %s104, %s105
      %p119 = scmp.eq.s32.totalorder %s22, 2
      %p120 = por %p118, %p119
      %p122 = scmp.ne.s32.totalorder %s105, %s121
      %p123 = scmp.eq.s32.totalorder %s22, 0
      %p124 = por %p122, %p123
      %s125 = ssub.s32 %s23, %s42
      %s126 = ssub.s32 %s24, %s38
      %s127 = sor.u32 %s125, %s126
      %p128 = scmp.eq.s32.totalorder %s127, 0
      %s130 = sadd.s32 %s129, 1
      %s131 = scalar_select %p128, %s129, %s130
      %p134 = pneg %p128
      %p135 = scmp.eq.s32.totalorder %s16, 2
      %p136 = por %p134, %p135
      %p137 = scmp.ne.s32.totalorder %s129, %s132
      %p138 = scmp.eq.s32.totalorder %s16, 0
      %p139 = por %p137, %p138
      %p140 = scmp.ne.s32.totalorder %s129, %s132
      %p141 = scmp.eq.s32.totalorder %s21, 2
      %p142 = por %p140, %p141
      %p143 = scmp.ne.s32.totalorder %s132, %s133
      %p144 = scmp.eq.s32.totalorder %s21, 0
      %p145 = por %p143, %p144
      %p146 = scmp.ne.s32.totalorder %s132, %s133
      %p147 = scmp.eq.s32.totalorder %s22, 2
      %p148 = por %p146, %p147
      %p150 = scmp.ne.s32.totalorder %s133, %s149
      %p151 = scmp.eq.s32.totalorder %s22, 0
      %p152 = por %p150, %p151
      %p153 = scmp.le.s32.totalorder 1, %s16
      %p154 = scmp.lt.s32.totalorder %s16, 4
      %p155 = pnand %p153, %p154
      %p156 = pneg %p155
      // Predicated region
      $region9: #{tpu_custom_call.1} parent=5 // pred_check
        _
      $region10: #{tpu_custom_call.1} parent=5 // pred_check_branch
        %158 = sbr.rel (%p155) target = $region12
      $region11: #{tpu_custom_call.1} parent=5 // pred_region
        %s159 = ssub.s32 %s16, 1
        // Predicated region
        $region13: #{tpu_custom_call.1} parent=11 // pred_check
          %p160 = pneg %p117
        $region14: #{tpu_custom_call.1} parent=11 // pred_check_branch
          %162 = sbr.rel (%p160) target = $region16
        $region15: #{tpu_custom_call.1} parent=11 // pred_region
          %p163 = scmp.lt.s32.totalorder %s27, 0
          %s164 = scalar_select %p163, %s27, 0
          %s165 = scalar_lea.vmem %s2, %s164
        $region16: #{tpu_custom_call.1} parent=11 // pred_fallthru
          _
      $region12: #{tpu_custom_call.1} parent=5 // pred_fallthru
        _
      %p166 = scmp.lt.s32.totalorder %s16, 3
      // Predicated region
      $region17: #{tpu_custom_call.1} parent=5 // pred_check
        %p167 = pneg %p166
      $region18: #{tpu_custom_call.1} parent=5 // pred_check_branch
        %169 = sbr.rel (%p167) target = $region20
      $region19: #{tpu_custom_call.1} parent=5 // pred_region
        // Predicated region
        $region21: #{tpu_custom_call.1} parent=19 // pred_check
          %p170 = pneg %p57
        $region22: #{tpu_custom_call.1} parent=19 // pred_check_branch
          %172 = sbr.rel (%p170) target = $region24
        $region23: #{tpu_custom_call.1} parent=19 // pred_region
          %s173 = sand.u32 %s47, 1
          %s174 = scalar_lea.sflag [#allocation4], %s173
          %s175 = sand.u32 %s47, 1
          %s176 = smul.addr %s175, 40
          %s177 = scalar_lea.vmem [#allocation3], %s176
          %s178 = smul.u32 10, %s23
          %s179 = ssub.s32 9, %s178
          %s180 = smul.u32 64, %s179
          %s182 = ssub.s32 640, %s180
          %183 = vsyncadd %s174, %s182
          %p184 = scmp.ne.s32.totalorder 0, %s180
          %s185 = smul.addr %s178, 3
          %s186 = sadd.s32 %s25, %s185
          %s187 = smul.addr %s186, 64
          %s188 = scalar_lea.hbm %s0, %s187
          %s189 = smul.u32 4, %s179
          %s190 = sshll.u32 %s177, 4
          %s191 = int_to_ptr.vmem [resolvable:$true] %s190
          %s192 = sshll.u32 %s189, 4
          %196 = dma.hbm_to_vmem [thread:$0]  (%p184), %s188, %s192, %s191, %s174, 192, 64, 4
        $region24: #{tpu_custom_call.1} parent=19 // pred_fallthru
          _
        // Predicated region
        $region25: #{tpu_custom_call.1} parent=19 // pred_check
          %p197 = pneg %p85
        $region26: #{tpu_custom_call.1} parent=19 // pred_check_branch
          %199 = sbr.rel (%p197) target = $region28
        $region27: #{tpu_custom_call.1} parent=19 // pred_region
          %s200 = sand.u32 %s75, 1
          %s201 = scalar_lea.sflag [#allocation7], %s200
          %s202 = sand.u32 %s75, 1
          %s203 = smul.addr %s202, 64
          %s204 = scalar_lea.vmem [#allocation6], %s203
          %s205 = smul.u32 16, %s25
          %s207 = ssub.s32 1024, 1024
          %208 = vsyncadd %s201, %s207
          %s209 = sadd.s32 %s24, %s205
          %s210 = smul.addr %s209, 64
          %s211 = scalar_lea.hbm %s1, %s210
          %s212 = sshll.u32 %s204, 4
          %s213 = int_to_ptr.vmem [resolvable:$true] %s212
          %218 = dma.hbm_to_vmem [thread:$0]  %s211, 1024, %s213, %s201, 64, 64, 4
        $region28: #{tpu_custom_call.1} parent=19 // pred_fallthru
          _
      $region20: #{tpu_custom_call.1} parent=5 // pred_fallthru
        _
      %p219 = scmp.le.s32.totalorder 1, %s16
      %p220 = scmp.lt.s32.totalorder %s16, 4
      %p221 = pnand %p219, %p220
      %p222 = pneg %p221
      // Predicated region
      $region29: #{tpu_custom_call.1} parent=5 // pred_check
        _
      $region30: #{tpu_custom_call.1} parent=5 // pred_check_branch
        %224 = sbr.rel (%p221) target = $region32
      $region31: #{tpu_custom_call.1} parent=5 // pred_region
        %s225 = ssub.s32 %s16, 1
        %s226 = sand.u32 %s50, 1
        %s227 = scalar_lea.sflag [#allocation4], %s226
        %s228 = sand.u32 %s50, 1
        %s229 = smul.addr %s228, 40
        %s230 = scalar_lea.vmem [#allocation3], %s229
        // Predicated region
        $region33: #{tpu_custom_call.1} parent=31 // pred_check
          %p231 = pneg %p63
        $region34: #{tpu_custom_call.1} parent=31 // pred_check_branch
          %233 = sbr.rel (%p231) target = $region36
        $region35: #{tpu_custom_call.1} parent=31 // pred_region
          %234 = dma.done %s227, 640
        $region36: #{tpu_custom_call.1} parent=31 // pred_fallthru
          _
        %s235 = sand.u32 %s78, 1
        %s236 = scalar_lea.sflag [#allocation7], %s235
        %s237 = sand.u32 %s78, 1
        %s238 = smul.addr %s237, 64
        %s239 = scalar_lea.vmem [#allocation6], %s238
        // Predicated region
        $region37: #{tpu_custom_call.1} parent=31 // pred_check
          %p240 = pneg %p91
        $region38: #{tpu_custom_call.1} parent=31 // pred_check_branch
          %242 = sbr.rel (%p240) target = $region40
        $region39: #{tpu_custom_call.1} parent=31 // pred_region
          %243 = dma.done %s236, 1024
        $region40: #{tpu_custom_call.1} parent=31 // pred_fallthru
          _
        %s244 = sand.u32 %s50, 1
        %s245 = scalar_lea.sflag [#allocation4], %s244
        %s246 = sand.u32 %s50, 1
        %s247 = smul.addr %s246, 40
        %s248 = scalar_lea.vmem [#allocation3], %s247
        %p249 = pneg %p63
        %p250 = pneg %p60
        %s251 = sand.u32 %s78, 1
        %s252 = scalar_lea.sflag [#allocation7], %s251
        %s253 = sand.u32 %s78, 1
        %s254 = smul.addr %s253, 64
        %s255 = scalar_lea.vmem [#allocation6], %s254
        %p256 = pneg %p91
        %p257 = pneg %p88
        %p258 = scmp.lt.s32.totalorder %s27, 0
        %s259 = scalar_select %p258, %s27, 0
        %s260 = scalar_lea.vmem %s2, %s259
        %p261 = pneg %p117
        %p262 = pneg %p114
        %p263 = pneg %p145
        %p264 = pneg %p142
        %s265 = smul.u32 10, %s26
        %s266 = ssub.s32 9, %s265
        %s267 = smul.u32 64, %s266
        %s268 = smul.u32 16, %s28
        %p269 = scmp.lt.s32.totalorder %s27, 0
        %s270 = scalar_select %p269, %s27, 0
        %s271 = scalar_lea.vmem %s2, %s270
        %s272 = smul.u32 10, %s26
        %s273 = ssub.s32 9, %s272
        %s274 = smul.u32 64, %s273
        %p276 = scmp.eq.s32.totalorder %s28, 0
        // Predicated region
        $region41: #{tpu_custom_call.1} parent=31 // pred_check
          %p277 = pneg %p276
        $region42: #{tpu_custom_call.1} parent=31 // pred_check_branch
          %279 = sbr.rel (%p277) target = $region44
        $region43: #{tpu_custom_call.1} parent=31 // pred_region
          %280 = vst [vmem:[#allocation2] sm:$0xff] 0.0
          %281 = vst [vmem:[#allocation2 + $0x8] sm:$0xff] 0.0
          %282 = vst [vmem:[#allocation2 + $0x10] sm:$0xff] 0.0
          %283 = vst [vmem:[#allocation2 + $0x18] sm:$0xff] 0.0
          %284 = vst [vmem:[#allocation2 + $0x20] sm:$0xff] 0.0
          %285 = vst [vmem:[#allocation2 + $0x28] sm:$0xff] 0.0
          %286 = vst [vmem:[#allocation2 + $0x30] sm:$0xff] 0.0
          %287 = vst [vmem:[#allocation2 + $0x38] sm:$0xff] 0.0
          %288 = vst [vmem:[#allocation2 + $0x40] sm:$0xff] 0.0
          %289 = vst [vmem:[#allocation2 + $0x48] sm:$0xff] 0.0
        $region44: #{tpu_custom_call.1} parent=31 // pred_fallthru
          _
        %v290 = vld [vmem:[#allocation2] sm:$0xff]
        %v291 = vld [vmem:[#allocation2 + $0x8] sm:$0xff]
        %v292 = vld [vmem:[#allocation2 + $0x10] sm:$0xff]
        %v293 = vld [vmem:[#allocation2 + $0x18] sm:$0xff]
        %v294 = vld [vmem:[#allocation2 + $0x20] sm:$0xff]
        %v295 = vld [vmem:[#allocation2 + $0x28] sm:$0xff]
        %v296 = vld [vmem:[#allocation2 + $0x30] sm:$0xff]
        %v297 = vld [vmem:[#allocation2 + $0x38] sm:$0xff]
        %v298 = vld [vmem:[#allocation2 + $0x40] sm:$0xff]
        %v299 = vld [vmem:[#allocation2 + $0x48] sm:$0xff]
        %v300 = vld [vmem:[%s230] sm:$0xf]
        %v301 = vld [vmem:[%s230 + $0x4] sm:$0xf]
        %v302 = vld [vmem:[%s230 + $0x8] sm:$0xf]
        %v303 = vld [vmem:[%s230 + $0xc] sm:$0xf]
        %v304 = vld [vmem:[%s230 + $0x10] sm:$0xf]
        %v305 = vld [vmem:[%s230 + $0x14] sm:$0xf]
        %v306 = vld [vmem:[%s230 + $0x18] sm:$0xf]
        %v307 = vld [vmem:[%s230 + $0x1c] sm:$0xf]
        %v308 = vld [vmem:[%s230 + $0x20] sm:$0xf]
        %v309 = vld [vmem:[%s230 + $0x24] sm:$0xf]
        %v310 = vld [vmem:[%s239] sm:$0xf]
        %v311 = vld [vmem:[%s239 + $0x4] sm:$0xf]
        %v312 = vld [vmem:[%s239 + $0x8] sm:$0xf]
        %v313 = vld [vmem:[%s239 + $0xc] sm:$0xf]
        %v314 = vld [vmem:[%s239 + $0x10] sm:$0xf]
        %v315 = vld [vmem:[%s239 + $0x14] sm:$0xf]
        %v316 = vld [vmem:[%s239 + $0x18] sm:$0xf]
        %v317 = vld [vmem:[%s239 + $0x1c] sm:$0xf]
        %v318 = vld [vmem:[%s239 + $0x20] sm:$0xf]
        %v319 = vld [vmem:[%s239 + $0x24] sm:$0xf]
        %v320 = vld [vmem:[%s239 + $0x28] sm:$0xf]
        %v321 = vld [vmem:[%s239 + $0x2c] sm:$0xf]
        %v322 = vld [vmem:[%s239 + $0x30] sm:$0xf]
        %v323 = vld [vmem:[%s239 + $0x34] sm:$0xf]
        %v324 = vld [vmem:[%s239 + $0x38] sm:$0xf]
        %v325 = vld [vmem:[%s239 + $0x3c] sm:$0xf]
        %v336 = vunpack.c.l.b16 %v300
        %v337 = vunpack.c.l.b16 %v301
        %v338 = vunpack.c.l.b16 %v302
        %v339 = vunpack.c.l.b16 %v303
        %v340 = vunpack.c.l.b16 %v304
        %v341 = vunpack.c.l.b16 %v305
        %v342 = vunpack.c.l.b16 %v306
        %v343 = vunpack.c.l.b16 %v307
        %v344 = vunpack.c.l.b16 %v308
        %v345 = vunpack.c.l.b16 %v309
        %v346 = vpack.c.b16 %v337, %v336
        %v347 = vpack.c.b16 %v339, %v338
        %v348 = vpack.c.b16 %v341, %v340
        %v349 = vpack.c.b16 %v343, %v342
        %v350 = vpack.c.b16 %v345, %v344
        %v372 = vunpack.c.l.b16 %v310
        %v373 = vunpack.c.l.b16 %v311
        %v374 = vunpack.c.l.b16 %v312
        %v375 = vunpack.c.l.b16 %v313
        %v376 = vunpack.c.l.b16 %v314
        %v377 = vunpack.c.l.b16 %v315
        %v378 = vunpack.c.l.b16 %v316
        %v379 = vunpack.c.l.b16 %v317
        %v380 = vunpack.c.l.b16 %v318
        %v381 = vunpack.c.l.b16 %v319
        %v382 = vunpack.c.l.b16 %v320
        %v383 = vunpack.c.l.b16 %v321
        %v384 = vunpack.c.l.b16 %v322
        %v385 = vunpack.c.l.b16 %v323
        %v386 = vunpack.c.l.b16 %v324
        %v387 = vunpack.c.l.b16 %v325
        %v388 = vpack.c.b16 %v373, %v372
        %v389 = vpack.c.b16 %v375, %v374
        %v390 = vpack.c.b16 %v377, %v376
        %v391 = vpack.c.b16 %v379, %v378
        %v392 = vpack.c.b16 %v381, %v380
        %v393 = vpack.c.b16 %v383, %v382
        %v394 = vpack.c.b16 %v385, %v384
        %v395 = vpack.c.b16 %v387, %v386
        %404 = vmatprep.subr.bf16.mxu0 0
        %405 = vmatpush1.bf16.msra.mxu0 %v388
        %406 = vmatprep.subr.bf16.mxu0 0
        %407 = vmatpush1.bf16.msra.mxu0 %v389
        %408 = vmatprep.subr.bf16.mxu0 0
        %409 = vmatpush1.bf16.msra.mxu0 %v390
        %410 = vmatprep.subr.bf16.mxu0 0
        %411 = vmatpush1.bf16.msra.mxu0 %v391
        %412 = vmatprep.subr.bf16.mxu0 0
        %413 = vmatpush1.bf16.msra.mxu0 %v392
        %414 = vmatprep.subr.bf16.mxu0 0
        %415 = vmatpush1.bf16.msra.mxu0 %v393
        %416 = vmatprep.subr.bf16.mxu0 0
        %417 = vmatpush1.bf16.msra.mxu0 %v394
        %418 = vmatprep.subr.bf16.mxu0 0
        %419 = vmatpush1.bf16.msra.mxu0 %v395
        %420 = vmatprep.subr.bf16.mxu0 0
        %421 = vmatpush1.bf16.msra.mxu0 0
        %422 = vmatprep.subr.bf16.mxu0 0
        %423 = vmatpush1.bf16.msra.mxu0 0
        %424 = vmatprep.subr.bf16.mxu0 0
        %425 = vmatpush1.bf16.msra.mxu0 0
        %426 = vmatprep.subr.bf16.mxu0 0
        %427 = vmatpush1.bf16.msra.mxu0 0
        %428 = vmatprep.subr.bf16.mxu0 0
        %429 = vmatpush1.bf16.msra.mxu0 0
        %430 = vmatprep.subr.bf16.mxu0 0
        %431 = vmatpush1.bf16.msra.mxu0 0
        %432 = vmatprep.subr.bf16.mxu0 0
        %433 = vmatpush1.bf16.msra.mxu0 0
        %434 = vmatprep.subr.bf16.mxu0 0
        %435 = vmatpush1.bf16.msra.mxu0 0
        %436 = vmatprep.mubr.bf16.mxu0 0
        %437 = vmatmul.mubr.bf16.gmra.mrb[0].mxu0 %v346
        %v438 = vpop.f32.mrb[0].mxu0
        %v439 = vadd.f32 0.0, %v438
        %v440 = vpop.f32.mrb[0].mxu0
        %v441 = vpop.f32.mrb[0].mxu0
        %v442 = vadd.f32 0.0, %v441
        %v443 = vpop.f32.mrb[0].mxu0
        %444 = vmatprep.mubr.bf16.mxu0 0
        %445 = vmatmul.mubr.bf16.gmra.mrb[0].mxu0 %v347
        %v446 = vpop.f32.mrb[0].mxu0
        %v447 = vadd.f32 0.0, %v446
        %v448 = vpop.f32.mrb[0].mxu0
        %v449 = vpop.f32.mrb[0].mxu0
        %v450 = vadd.f32 0.0, %v449
        %v451 = vpop.f32.mrb[0].mxu0
        %452 = vmatprep.mubr.bf16.mxu0 0
        %453 = vmatmul.mubr.bf16.gmra.mrb[0].mxu0 %v348
        %v454 = vpop.f32.mrb[0].mxu0
        %v455 = vadd.f32 0.0, %v454
        %v456 = vpop.f32.mrb[0].mxu0
        %v457 = vpop.f32.mrb[0].mxu0
        %v458 = vadd.f32 0.0, %v457
        %v459 = vpop.f32.mrb[0].mxu0
        %460 = vmatprep.mubr.bf16.mxu0 0
        %461 = vmatmul.mubr.bf16.gmra.mrb[0].mxu0 %v349
        %v462 = vpop.f32.mrb[0].mxu0
        %v463 = vadd.f32 0.0, %v462
        %v464 = vpop.f32.mrb[0].mxu0
        %v465 = vpop.f32.mrb[0].mxu0
        %v466 = vadd.f32 0.0, %v465
        %v467 = vpop.f32.mrb[0].mxu0
        %468 = vmatprep.mubr.bf16.mxu0 0
        %469 = vmatmul.mubr.bf16.gmra.mrb[0].mxu0 %v350
        %v470 = vpop.f32.mrb[0].mxu0
        %v471 = vadd.f32 0.0, %v470
        %v472 = vpop.f32.mrb[0].mxu0
        %v473 = vpop.f32.mrb[0].mxu0
        %v474 = vadd.f32 0.0, %v473
        %v475 = vpop.f32.mrb[0].mxu0
        %476 = vdwg.mxu0
        %v477 = vadd.f32 %v290, %v439
        %v478 = vadd.f32 %v291, %v442
        %v479 = vadd.f32 %v292, %v447
        %v480 = vadd.f32 %v293, %v450
        %v481 = vadd.f32 %v294, %v455
        %v482 = vadd.f32 %v295, %v458
        %v483 = vadd.f32 %v296, %v463
        %v484 = vadd.f32 %v297, %v466
        %v485 = vadd.f32 %v298, %v471
        %v486 = vadd.f32 %v299, %v474
        %487 = vst [vmem:[#allocation2] sm:$0xff] %v477
        %488 = vst [vmem:[#allocation2 + $0x8] sm:$0xff] %v478
        %489 = vst [vmem:[#allocation2 + $0x10] sm:$0xff] %v479
        %490 = vst [vmem:[#allocation2 + $0x18] sm:$0xff] %v480
        %491 = vst [vmem:[#allocation2 + $0x20] sm:$0xff] %v481
        %492 = vst [vmem:[#allocation2 + $0x28] sm:$0xff] %v482
        %493 = vst [vmem:[#allocation2 + $0x30] sm:$0xff] %v483
        %494 = vst [vmem:[#allocation2 + $0x38] sm:$0xff] %v484
        %495 = vst [vmem:[#allocation2 + $0x40] sm:$0xff] %v485
        %496 = vst [vmem:[#allocation2 + $0x48] sm:$0xff] %v486
        %p497 = scmp.eq.s32.totalorder %s28, 2
        // Predicated region
        $region45: #{tpu_custom_call.1} parent=31 // pred_check
          %p498 = pneg %p497
        $region46: #{tpu_custom_call.1} parent=31 // pred_check_branch
          %500 = sbr.rel (%p498) target = $region48
        $region47: #{tpu_custom_call.1} parent=31 // pred_region
          %v501 = vld [vmem:[#allocation2] sm:$0xff]
          %v502 = vld [vmem:[#allocation2 + $0x8] sm:$0xff]
          %v503 = vld [vmem:[#allocation2 + $0x10] sm:$0xff]
          %v504 = vld [vmem:[#allocation2 + $0x18] sm:$0xff]
          %v505 = vld [vmem:[#allocation2 + $0x20] sm:$0xff]
          %v506 = vld [vmem:[#allocation2 + $0x28] sm:$0xff]
          %v507 = vld [vmem:[#allocation2 + $0x30] sm:$0xff]
          %v508 = vld [vmem:[#allocation2 + $0x38] sm:$0xff]
          %v509 = vld [vmem:[#allocation2 + $0x40] sm:$0xff]
          %v510 = vld [vmem:[#allocation2 + $0x48] sm:$0xff]
          %v511 = vld [vmem:[%s271] sm:$0x1]
          %v513 = vlaneseq
          %v514 = vshrl.u32 %v513, 7
          %v515 = vsub.s32 0, %v514
          %v516 = vrot.slane %v511, %v515
          %v518 = vadd.f32 %v501, %v516
          %v519 = vadd.f32 %v502, %v516
          %v520 = vadd.f32 %v503, %v516
          %v521 = vadd.f32 %v504, %v516
          %v522 = vadd.f32 %v505, %v516
          %v523 = vadd.f32 %v506, %v516
          %v524 = vadd.f32 %v507, %v516
          %v525 = vadd.f32 %v508, %v516
          %v526 = vadd.f32 %v509, %v516
          %v527 = vadd.f32 %v510, %v516
          %v528 = vmul.f32 %v518, 0.1
          %v529 = vmul.f32 %v519, 0.1
          %v530 = vmul.f32 %v520, 0.1
          %v531 = vmul.f32 %v521, 0.1
          %v532 = vmul.f32 %v522, 0.1
          %v533 = vmul.f32 %v523, 0.1
          %v534 = vmul.f32 %v524, 0.1
          %v535 = vmul.f32 %v525, 0.1
          %v536 = vmul.f32 %v526, 0.1
          %v537 = vmul.f32 %v527, 0.1
          %v538 = vmax.f32 %v518, %v528
          %v539 = vmax.f32 %v519, %v529
          %v540 = vmax.f32 %v520, %v530
          %v541 = vmax.f32 %v521, %v531
          %v542 = vmax.f32 %v522, %v532
          %v543 = vmax.f32 %v523, %v533
          %v544 = vmax.f32 %v524, %v534
          %v545 = vmax.f32 %v525, %v535
          %v546 = vmax.f32 %v526, %v536
          %v547 = vmax.f32 %v527, %v537
          %v548 = vpack.c.bf16 %v539, %v538
          %v549 = vpack.c.bf16 %v541, %v540
          %v550 = vpack.c.bf16 %v543, %v542
          %v551 = vpack.c.bf16 %v545, %v544
          %v552 = vpack.c.bf16 %v547, %v546
          %v558 = vunpack.c.l.b16 %v548
          %v559 = vunpack.c.h.b16 %v548
          %v560 = vunpack.c.l.b16 %v549
          %v561 = vunpack.c.h.b16 %v549
          %v562 = vunpack.c.l.b16 %v550
          %v563 = vunpack.c.h.b16 %v550
          %v564 = vunpack.c.l.b16 %v551
          %v565 = vunpack.c.h.b16 %v551
          %v566 = vunpack.c.l.b16 %v552
          %v567 = vunpack.c.h.b16 %v552
          %v568 = vpack.c.b16 %v558, %v558
          %v569 = vpack.c.b16 %v559, %v559
          %v570 = vpack.c.b16 %v560, %v560
          %v571 = vpack.c.b16 %v561, %v561
          %v572 = vpack.c.b16 %v562, %v562
          %v573 = vpack.c.b16 %v563, %v563
          %v574 = vpack.c.b16 %v564, %v564
          %v575 = vpack.c.b16 %v565, %v565
          %v576 = vpack.c.b16 %v566, %v566
          %v577 = vpack.c.b16 %v567, %v567
          %588 = vst [vmem:[#allocation8] sm:$0xf] %v568
          %589 = vst [vmem:[#allocation8 + $0x4] sm:$0xf] %v569
          %590 = vst [vmem:[#allocation8 + $0x8] sm:$0xf] %v570
          %591 = vst [vmem:[#allocation8 + $0xc] sm:$0xf] %v571
          %592 = vst [vmem:[#allocation8 + $0x10] sm:$0xf] %v572
          %593 = vst [vmem:[#allocation8 + $0x14] sm:$0xf] %v573
          %594 = vst [vmem:[#allocation8 + $0x18] sm:$0xf] %v574
          %595 = vst [vmem:[#allocation8 + $0x1c] sm:$0xf] %v575
          %596 = vst [vmem:[#allocation8 + $0x20] sm:$0xf] %v576
          %597 = vst [vmem:[#allocation8 + $0x24] sm:$0xf] %v577
        $region48: #{tpu_custom_call.1} parent=31 // pred_fallthru
          _
        // Predicated region
        $region49: #{tpu_custom_call.1} parent=31 // pred_check
          %p598 = pneg %p142
        $region50: #{tpu_custom_call.1} parent=31 // pred_check_branch
          %600 = sbr.rel (%p598) target = $region52
        $region51: #{tpu_custom_call.1} parent=31 // pred_region
          %s601 = smul.u32 10, %s26
          %s602 = ssub.s32 9, %s601
          %s603 = smul.u32 64, %s602
          %s605 = ssub.s32 640, %s603
          %606 = vsyncadd [#allocation5], %s605
          %p607 = scmp.ne.s32.totalorder 0, %s603
          %s608 = sadd.s32 %s27, %s601
          %s609 = smul.addr %s608, 64
          %s610 = scalar_lea.hbm %s3, %s609
          %s611 = smul.u32 4, %s602
          %s612 = sshll.u32 [#allocation8], 4
          %s613 = int_to_ptr.vmem [resolvable:$true] %s612
          %s614 = sshll.u32 %s611, 4
          %618 = dma.vmem_to_hbm [thread:$0]  (%p607), %s613, %s614, %s610, [#allocation5], 64, 64, 4
        $region52: #{tpu_custom_call.1} parent=31 // pred_fallthru
          _
        // Predicated region
        $region53: #{tpu_custom_call.1} parent=31 // pred_check
          %p619 = pneg %p142
        $region54: #{tpu_custom_call.1} parent=31 // pred_check_branch
          %621 = sbr.rel (%p619) target = $region56
        $region55: #{tpu_custom_call.1} parent=31 // pred_region
          %622 = dma.done [#allocation5], 640
        $region56: #{tpu_custom_call.1} parent=31 // pred_fallthru
          _
      $region32: #{tpu_custom_call.1} parent=5 // pred_fallthru
        _
      %p623 = scmp.le.s32.totalorder 2, %s16
      // Predicated region
      $region57: #{tpu_custom_call.1} parent=5 // pred_check
        %p624 = pneg %p623
      $region58: #{tpu_custom_call.1} parent=5 // pred_check_branch
        %626 = sbr.rel (%p624) target = $region60
      $region59: #{tpu_custom_call.1} parent=5 // pred_region
        %s627 = ssub.s32 %s16, 2
      $region60: #{tpu_custom_call.1} parent=5 // pred_fallthru
        _
    $region6: #{tpu_custom_call.1} parent=1 // loop_footer
      %s20 = sadd.s32 1, %s16
    $region7: #{tpu_custom_call.1} parent=1 // loop_footer_branch
      %15 = sbr.rel target = $region3
    $region8: #{tpu_custom_call.1} parent=1 // loop_exit
      _
    %628 = vsyncpa [#allocation4], 1
    %s629 = scalar_lea.sflag [#allocation4], 1
    %630 = vsyncpa %s629, 1
    %631 = vsyncpa [#allocation7], 1
    %s632 = scalar_lea.sflag [#allocation7], 1
    %633 = vsyncpa %s632, 1
    %634 = vsyncpa [#allocation5], 1
    %s635 = scalar_lea.sflag [#allocation5], 1
    %636 = vsyncpa %s635, 1

</llo_original>
